<compile_context>
chip_gen: v7x
topology: tpu7x:2x2x1
jax: 0.10.0
libtpu: 0.0.40
codegen_flags: <defaults>
</compile_context>

<pallas_src>
import functools
import math

import jax
import jax.numpy as jnp
from jax.experimental import pallas as pl
from jax.experimental.pallas import tpu as pltpu


_SQRT2 = math.sqrt(2.0)
_MAX_LANES = 8192                         # cap on lane-dense last dim (mult of 128)
_SCOPED_VMEM_LIMIT = 32 * 1024 * 1024     # safe on v5e/v6e (128 MiB) and v7x (64 MiB)


# ---------------------------------------------------------------------------
# Device-aware tiling parameters
# ---------------------------------------------------------------------------
def _device_params():
    """Return (num_tensorcores, per-block byte budget) for the local TPU."""
    num_tc, budget = 1, 4 * 1024 * 1024
    kind = ""
    try:
        kind = jax.devices()[0].device_kind.lower()
    except Exception:
        pass
    if "v7" in kind:
        num_tc, budget = 2, 6 * 1024 * 1024   # 4 double-buffered bufs = 24 MiB < 32 MiB
    elif "v6" in kind:
        num_tc, budget = 1, 6 * 1024 * 1024
    elif "v5" in kind:
        num_tc, budget = 1, 3 * 1024 * 1024
    try:  # refine from hardware info when the field is available
        vmem = getattr(pltpu.get_tpu_info(), "vmem_capacity_bytes", None)
        if vmem:
            budget = min(budget, max(1 << 20, vmem // 10))
    except Exception:
        pass
    return num_tc, budget


def _round_up(a, m):
    return ((a + m - 1) // m) * m


def _pick_lane_dim(n):
    """Largest multiple-of-128 divisor of n (capped); None if n % 128 != 0."""
    if n % 128 != 0:
        return None
    best, lanes, cap = 128, 128, min(n, _MAX_LANES)
    while lanes <= cap:
        if n % lanes == 0:
            best = lanes
        lanes += 128
    return best


def _pick_divisor_tile(dim, candidates):
    """Largest candidate that divides dim, else the full extent."""
    for c in candidates:
        if dim % c == 0:
            return c
    return dim


def _select_tile_rows(rows, bytes_per_row, sublane, num_tc, budget):
    """Row-tile size: big blocks, sublane aligned, split only on multi-TC chips."""
    max_tile_rows = max(sublane, (budget // bytes_per_row) // sublane * sublane)
    if rows <= sublane:
        return rows                                   # tiny: one full-extent block
    total_bytes = rows * bytes_per_row
    if num_tc >= 2 and total_bytes >= 2 * 1024 * 1024 and rows >= 2 * sublane:
        # v7x: split across the 2 TensorCores with an even, balanced block count.
        tile = min(max_tile_rows, _round_up(pl.cdiv(rows, 2), sublane))
        nblk = pl.cdiv(rows, tile)
        if nblk > 1 and nblk % 2 == 1:
            tile = max(sublane, _round_up(pl.cdiv(rows, nblk + 1), sublane))
        return tile
    # Single-TC chips (v5e/v6e): fewest, largest blocks; no forced split.
    return rows if rows <= max_tile_rows else max_tile_rows


# ---------------------------------------------------------------------------
# 1) Standalone ScaledLeakyReLU: out = leaky_relu(x, 0.2) * sqrt(2)
#    (kept for producers that are not Pallas kernels)
# ---------------------------------------------------------------------------
def _scaled_leaky_relu_kernel(x_ref, o_ref, *, negative_slope, scale):
    x = x_ref[...]
    if 0.0 < negative_slope < 1.0:
        y = jnp.maximum(x, x * negative_slope)        # single vmax
    else:
        y = jnp.where(x >= 0, x, x * negative_slope)
    o_ref[...] = (y * scale).astype(o_ref.dtype)


def scaled_leaky_relu(x, negative_slope=0.2):
    orig_shape, dtype = x.shape, x.dtype
    n = int(x.size)
    if n == 0:
        return x
    itemsize = jnp.dtype(dtype).itemsize
    sublane = max(8, 32 // itemsize)                  # 8 f32 / 16 bf16 / 32 int8
    num_tc, budget = _device_params()

    # Lane-dense slab with NO padding copy whenever x.size % 128 == 0.
    lanes = _pick_lane_dim(n)
    padded = None
    if lanes is None:
        lanes = 1024                                  # genuinely odd size: pad fallback
        rows = pl.cdiv(n, lanes)
        padded = rows * lanes
        flat = jnp.pad(x.reshape(-1), (0, padded - n))
    else:
        rows = n // lanes
        flat = x.reshape(-1)
    x2 = flat.reshape(rows, lanes)

    tile_rows = _select_tile_rows(rows, lanes * itemsize, sublane, num_tc, budget)
    grid = (pl.cdiv(rows, tile_rows),)

    kernel = functools.partial(
        _scaled_leaky_relu_kernel, negative_slope=negative_slope, scale=_SQRT2
    )

    out2 = pl.pallas_call(
        kernel,
        out_shape=jax.ShapeDtypeStruct((rows, lanes), dtype),
        grid_spec=pl.GridSpec(
            grid=grid,
            in_specs=[pl.BlockSpec((tile_rows, lanes), lambda i: (i, 0))],
            out_specs=pl.BlockSpec((tile_rows, lanes), lambda i: (i, 0)),
        ),
        compiler_params=pltpu.CompilerParams(
            dimension_semantics=("parallel",),
            vmem_limit_bytes=_SCOPED_VMEM_LIMIT,
        ),
        cost_estimate=pl.CostEstimate(
            flops=3 * n, transcendentals=0, bytes_accessed=2 * n * itemsize
        ),
    )(x2)

    out = out2.reshape(-1)
    if padded is not None:
        out = out[:n]
    return out.reshape(orig_shape)


# ---------------------------------------------------------------------------
# 2) Fused EqualLinear: y = x @ (weight*scale).T (+ bias*lr_mul)
#    with optional fused_leaky_relu epilogue applied to the f32 accumulator.
# ---------------------------------------------------------------------------
def _equal_linear_kernel(x_ref, w_ref, b_ref, o_ref, acc_ref, *,
                         w_scale, bias_mul, negative_slope, act_scale,
                         activate, has_bias):
    k = pl.program_id(1)

    @pl.when(k == 0)
    def _():
        acc_ref[...] = jnp.zeros_like(acc_ref)

    acc_ref[...] += jnp.dot(x_ref[...], w_ref[...],
                            preferred_element_type=jnp.float32)

    @pl.when(k == pl.num_programs(1) - 1)
    def _():
        y = acc_ref[...] * w_scale
        if has_bias:
            y = y + b_ref[...].astype(jnp.float32) * bias_mul
        if activate:
            y = jnp.maximum(y, y * negative_slope) * act_scale
        o_ref[...] = y.astype(o_ref.dtype)


def equal_linear(x, weight, bias=None, *, lr_mul=1.0, w=1.0, activation=None,
                 negative_slope=0.2):
    """EqualLinear.forward with the activation fused into the matmul epilogue.

    x: (M, K); weight: (N, K) torch layout; bias: (N,) or None.
    """
    M, K = x.shape
    N = weight.shape[0]
    w_scale = w / math.sqrt(K) * lr_mul
    wt = weight.T                                    # one-off parameter transpose
    has_bias = bias is not None
    b2 = (bias if has_bias else jnp.zeros((N,), x.dtype)).reshape(1, N)
    activate = activation is not None
    itemsize = jnp.dtype(x.dtype).itemsize

    tn = _pick_divisor_tile(N, (512, 256, 128))
    tk = _pick_divisor_tile(K, (2048, 1024, 512, 256, 128))
    grid = (N // tn, K // tk)

    kernel = functools.partial(
        _equal_linear_kernel, w_scale=w_scale, bias_mul=float(lr_mul),
        negative_slope=negative_slope, act_scale=_SQRT2,
        activate=activate, has_bias=has_bias,
    )

    return pl.pallas_call(
        kernel,
        out_shape=jax.ShapeDtypeStruct((M, N), x.dtype),
        grid_spec=pltpu.PrefetchScalarGridSpec(
            num_scalar_prefetch=0,
            grid=grid,
            in_specs=[pl.BlockSpec((M, tk), lambda n, k: (0, k)),
                      pl.BlockSpec((tk, tn), lambda n, k: (k, n)),
                      pl.BlockSpec((1, tn), lambda n, k: (0, n))],
            out_specs=pl.BlockSpec((M, tn), lambda n, k: (0, n)),
            scratch_shapes=[pltpu.VMEM((M, tn), jnp.float32)],
        ),
        compiler_params=pltpu.CompilerParams(
            dimension_semantics=("parallel", "arbitrary"),
            vmem_limit_bytes=_SCOPED_VMEM_LIMIT,
        ),
        cost_estimate=pl.CostEstimate(
            flops=2 * M * K * N, transcendentals=0,
            bytes_accessed=(M * K + K * N + M * N) * itemsize,
        ),
    )(x, wt, b2)


# ---------------------------------------------------------------------------
# 3) Fused 1x1 EqualConv2d (+ FusedLeakyReLU-style bias & activation epilogue)
#    — covers the Discriminator's first ConvLayer(in_dim, channels[size], 1).
# ---------------------------------------------------------------------------
def _conv1x1_kernel(x_ref, w_ref, b_ref, o_ref, *, w_scale, negative_slope,
                    act_scale, activate, has_bias):
    x = x_ref[0]                                     # (Cin, thw)
    y = jnp.dot(w_ref[...], x, preferred_element_type=jnp.float32) * w_scale
    if has_bias:
        y = y + b_ref[...].astype(jnp.float32)       # (Cout, 1) broadcast
    if activate:
        y = jnp.maximum(y, y * negative_slope) * act_scale
    o_ref[0] = y.astype(o_ref.dtype)


def equal_conv2d_1x1(x, weight, bias=None, *, activate=True, negative_slope=0.2):
    """1x1 EqualConv2d with bias + leaky_relu*sqrt(2) fused in the epilogue.

    x: (N, Cin, H, W); weight: (Cout, Cin, 1, 1); bias: (Cout,) or None.
    """
    N, Cin, H, W = x.shape
    Cout = weight.shape[0]
    HW = H * W
    w_scale = 1.0 / math.sqrt(Cin)                   # kernel_size=1, groups=1
    w2 = weight.reshape(Cout, Cin)
    has_bias = bias is not None
    b2 = (bias if has_bias else jnp.zeros((Cout,), x.dtype)).reshape(Cout, 1)
    x3 = x.reshape(N, Cin, HW)                       # free reshape (contiguous)
    thw = _pick_divisor_tile(HW, (2048, 1024, 512, 256, 128))
    itemsize = jnp.dtype(x.dtype).itemsize
    grid = (N, HW // thw)

    kernel = functools.partial(
        _conv1x1_kernel, w_scale=w_scale, negative_slope=negative_slope,
        act_scale=_SQRT2, activate=activate, has_bias=has_bias,
    )

    out = pl.pallas_call(
        kernel,
        out_shape=jax.ShapeDtypeStruct((N, Cout, HW), x.dtype),
        grid_spec=pltpu.PrefetchScalarGridSpec(
            num_scalar_prefetch=0,
            grid=grid,
            in_specs=[pl.BlockSpec((1, Cin, thw), lambda b, s: (b, 0, s)),
                      pl.BlockSpec((Cout, Cin), lambda b, s: (0, 0)),
                      pl.BlockSpec((Cout, 1), lambda b, s: (0, 0))],
            out_specs=pl.BlockSpec((1, Cout, thw), lambda b, s: (b, 0, s)),
        ),
        compiler_params=pltpu.CompilerParams(
            dimension_semantics=("parallel", "parallel"),
            vmem_limit_bytes=_SCOPED_VMEM_LIMIT,
        ),
        cost_estimate=pl.CostEstimate(
            flops=2 * N * HW * Cin * Cout, transcendentals=0,
            bytes_accessed=(N * Cin * HW + Cout * Cin + N * Cout * HW) * itemsize,
        ),
    )(x3, w2, b2)
    return out.reshape(N, Cout, H, W)


# ---------------------------------------------------------------------------
if __name__ == "__main__":
    key = jax.random.PRNGKey(0)
    ks = jax.random.split(key, 10)

    # --- standalone ScaledLeakyReLU -----------------------------------------
    tests = [
        jax.random.normal(ks[0], (2, 4, 16, 16), dtype=jnp.float32),   # NCHW activation
        jax.random.normal(ks[1], (3, 7, 11, 13), dtype=jnp.float32),   # odd size -> pad path
        jax.random.normal(ks[2], (2, 128, 32, 32), dtype=jnp.float32), # larger, zero-copy slab
        jax.random.normal(ks[3], (2, 4, 16, 16), dtype=jnp.bfloat16),  # bf16 path
    ]
    for x in tests:
        out = jax.block_until_ready(scaled_leaky_relu(x, 0.2))
        ref = jnp.where(x >= 0, x, 0.2 * x) * _SQRT2
        assert out.shape == x.shape and out.dtype == x.dtype
        tol = 1e-6 if x.dtype == jnp.float32 else 2e-2
        assert jnp.allclose(out.astype(jnp.float32), ref.astype(jnp.float32),
                            atol=tol, rtol=tol), f"slrelu mismatch {x.shape} {x.dtype}"

    # --- fused EqualLinear + fused_lrelu (final_linear[0], small dims) ------
    xl = jax.random.normal(ks[4], (2, 512), dtype=jnp.float32)
    w1 = jax.random.normal(ks[5], (256, 512), dtype=jnp.float32)
    b1 = jax.random.normal(ks[6], (256,), dtype=jnp.float32) * 0.1
    y1 = jax.block_until_ready(equal_linear(xl, w1, b1, activation="fused_lrelu"))
    r1 = xl @ (w1 * (1.0 / math.sqrt(512))).T + b1
    ref1 = jnp.maximum(r1, 0.2 * r1) * _SQRT2
    assert jnp.allclose(y1, ref1, atol=1e-4, rtol=1e-4), "equal_linear(act) mismatch"

    # --- EqualLinear without activation (final_linear[1], out_dim=1) --------
    w2 = jax.random.normal(ks[7], (1, 256), dtype=jnp.float32)
    b2 = jnp.zeros((1,), dtype=jnp.float32)
    y2 = jax.block_until_ready(equal_linear(y1, w2, b2, activation=None))
    ref2 = y1 @ (w2 * (1.0 / math.sqrt(256))).T + b2
    assert jnp.allclose(y2, ref2, atol=1e-4, rtol=1e-4), "equal_linear mismatch"

    # --- fused 1x1 EqualConv2d + bias + act (first ConvLayer) ---------------
    xc = jax.random.normal(ks[8], (2, 3, 16, 16), dtype=jnp.float32)
    wc = jax.random.normal(ks[9], (32, 3, 1, 1), dtype=jnp.float32)
    bc = jax.random.normal(jax.random.PRNGKey(1), (32,), dtype=jnp.float32) * 0.1
    yc = jax.block_until_ready(equal_conv2d_1x1(xc, wc, bc, activate=True))
    rc = jnp.einsum("nchw,oc->nohw", xc, wc.reshape(32, 3) * (1.0 / math.sqrt(3)))
    rc = rc + bc.reshape(1, -1, 1, 1)
    refc = jnp.maximum(rc, 0.2 * rc) * _SQRT2
    assert jnp.allclose(yc, refc, atol=1e-4, rtol=1e-4), "conv1x1 mismatch"

    print("KERNEL_OK")
</pallas_src>

<mosaic_0001>
module attributes {stable_mosaic.version = 11 : i64} {
  func.func @_scaled_leaky_relu_kernel(%arg0: i32, %arg1: memref<1x2048xf32, #tpu.memory_space<vmem>>, %arg2: memref<1x2048xf32, #tpu.memory_space<vmem>>) attributes {dimension_semantics = [#tpu.dimension_semantics<parallel>], iteration_bounds = array<i64: 1>, scalar_prefetch = 0 : i64, scratch_operands = 0 : i64, tpu.core_type = #tpu.core_type<tc>, window_params = [{transform_indices = @transform_0, window_bounds = array<i64: 1, 2048>}, {transform_indices = @transform_1, window_bounds = array<i64: 1, 2048>}]} {
    %c0 = arith.constant 0 : index
    %c0_0 = arith.constant 0 : index
    %0 = vector.load %arg1[%c0, %c0_0] : memref<1x2048xf32, #tpu.memory_space<vmem>>, vector<1x2048xf32>
    %cst = arith.constant 2.000000e-01 : f32
    %1 = vector.broadcast %cst : f32 to vector<1x2048xf32>
    %2 = arith.mulf %0, %1 : vector<1x2048xf32>
    %3 = arith.maximumf %0, %2 : vector<1x2048xf32>
    %cst_1 = arith.constant 1.41421354 : f32
    %4 = vector.broadcast %cst_1 : f32 to vector<1x2048xf32>
    %5 = arith.mulf %3, %4 : vector<1x2048xf32>
    %c0_2 = arith.constant 0 : index
    %c0_3 = arith.constant 0 : index
    %6 = vector.load %arg2[%c0_2, %c0_3] : memref<1x2048xf32, #tpu.memory_space<vmem>>, vector<1x2048xf32>
    tpu.vector_store %arg2[%c0_2, %c0_3], %5 {strides = array<i32>} : memref<1x2048xf32, #tpu.memory_space<vmem>>, vector<1x2048xf32>,
    return
  }
  func.func @transform_0(%arg0: i32) -> (i32, i32) {
    %c0_i32 = arith.constant 0 : i32
    %c0_i32_0 = arith.constant 0 : i32
    return %arg0, %c0_i32 : i32, i32
  }
  func.func @transform_1(%arg0: i32) -> (i32, i32) {
    %c0_i32 = arith.constant 0 : i32
    %c0_i32_0 = arith.constant 0 : i32
    return %arg0, %c0_i32 : i32, i32
  }
}

</mosaic_0001>

<llo_original>
// kernel: tpu_custom_call.1
$region0: #{tpu_custom_call.1}
  #allocation0 [shape = 'u32[]', space=smem, size = 0x4, offset = 0x4, fixed_abs, tag = 'smem constant byte address 0x4 - core index']
  #allocation1 [shape = 'u32[144,128]{1,0:T(1,128)}', space=vmem, size = 0x12000, scoped, tag = 'internal scratch']
  %s0 = inlined_call_operand.hbm [shape: f32[1,2048], index: 0, kind: input, shape index: {}]
  %s1 = inlined_call_operand.hbm [shape: f32[1,2048], index: 1, kind: output, shape index: {}]
  %s2 = sld [smem:[#allocation0]]
  $region18: #{tpu_custom_call.1} parent=0
    _
  %s4 = ssub.s32 1, %s2
  %s5 = scalar_select 0, %s4, %s2
  $region1: #{tpu_custom_call.1} parent=0
    #allocation2 [shape = 'u8[8192]{0}', space=vmem, size = 0x2000, scoped, tag = 'input window, operand 0, single buffered']
    #allocation3 [shape = 's32[1]{0}', space=sflag, size = 0x4, scoped, tag = 'scoped memory for tpu_custom_call.1']
    #allocation4 [shape = 's32[1]{0}', space=sflag, size = 0x4, scoped, tag = 'scoped memory for tpu_custom_call.1']
    #allocation5 [shape = 'u8[8192]{0}', space=vmem, size = 0x2000, scoped, tag = 'output window, operand 0, single buffered']
    %6 = vsyncpa [#allocation3], 0
    %7 = vsyncpa [#allocation4], 0
    // Predicated region
    $region2: #{tpu_custom_call.1} parent=1 // pred_check
      _
    $region3: #{tpu_custom_call.1} parent=1 // pred_check_branch
      %9 = sbr.rel (0) target = $region5
    $region4: #{tpu_custom_call.1} parent=1 // pred_region
      %s11 = ssub.s32 256, 256
      %12 = vsyncadd [#allocation3], %s11
      %s14 = sshll.u32 [#allocation2], 4
      %s15 = int_to_ptr.vmem [resolvable:$true] %s14
      %17 = dma.hbm_to_vmem [thread:$0]  %s0, 256, %s15, [#allocation3]
    $region5: #{tpu_custom_call.1} parent=1 // pred_fallthru
      _
    // Predicated region
    $region6: #{tpu_custom_call.1} parent=1 // pred_check
      _
    $region7: #{tpu_custom_call.1} parent=1 // pred_check_branch
      %19 = sbr.rel (0) target = $region9
    $region8: #{tpu_custom_call.1} parent=1 // pred_region
      %20 = dma.done [#allocation3], 256
    $region9: #{tpu_custom_call.1} parent=1 // pred_fallthru
      _
    %v21 = vld [vmem:[#allocation2] sm:$0xff]
    %v22 = vld [vmem:[#allocation2 + $0x8] sm:$0xff]
    %v23 = vmul.f32 %v21, 0.2
    %v24 = vmul.f32 %v22, 0.2
    %v25 = vmax.f32 %v21, %v23
    %v26 = vmax.f32 %v22, %v24
    %v27 = vmul.f32 %v25, 1.4142135
    %v28 = vmul.f32 %v26, 1.4142135
    %29 = vst [vmem:[#allocation5] sm:$0xff] %v27
    %30 = vst [vmem:[#allocation5 + $0x8] sm:$0xff] %v28
    // Predicated region
    $region10: #{tpu_custom_call.1} parent=1 // pred_check
      _
    $region11: #{tpu_custom_call.1} parent=1 // pred_check_branch
      %32 = sbr.rel (0) target = $region13
    $region12: #{tpu_custom_call.1} parent=1 // pred_region
      %s34 = ssub.s32 256, 256
      %35 = vsyncadd [#allocation4], %s34
      %s37 = sshll.u32 [#allocation5], 4
      %s38 = int_to_ptr.vmem [resolvable:$true] %s37
      %40 = dma.vmem_to_hbm [thread:$0]  %s38, 256, %s1, [#allocation4]
    $region13: #{tpu_custom_call.1} parent=1 // pred_fallthru
      _
    // Predicated region
    $region14: #{tpu_custom_call.1} parent=1 // pred_check
      _
    $region15: #{tpu_custom_call.1} parent=1 // pred_check_branch
      %42 = sbr.rel (0) target = $region17
    $region16: #{tpu_custom_call.1} parent=1 // pred_region
      %43 = dma.done [#allocation4], 256
    $region17: #{tpu_custom_call.1} parent=1 // pred_fallthru
      _
    %44 = vsyncpa [#allocation3], 1
    %45 = vsyncpa [#allocation4], 1

</llo_original>
